<compile_context>
chip_gen: v5e
topology: v5e:2x2
jax: 0.10.0
libtpu: 0.0.40
codegen_flags: <defaults>
</compile_context>

<pallas_src>
import functools

import jax
import jax.numpy as jnp
from jax.experimental import pallas as pl
from jax.experimental.pallas import tpu as pltpu


def _cross_entropy_kernel(x_ref, tgt_ref, w_ref, out_ref, *, n_rows, tile_n):
    x = x_ref[...].astype(jnp.float32)        # (TILE_N, C), upcast on VPU
    tgt = tgt_ref[...]                        # (TILE_N, 1) int32
    w_eff = w_ref[...]                        # (TILE_N, 1) f32 (0 for ignored targets)

    tn, c = x.shape

    # Gather x[n, y_n] via a masked row-reduction (2D iota required on TPU).
    col = jax.lax.broadcasted_iota(jnp.int32, (tn, c), 1)
    is_tgt = col == tgt                                               # (TILE_N, C)
    x_y = jnp.sum(jnp.where(is_tgt, x, 0.0), axis=1, keepdims=True)   # (TILE_N, 1)

    # Numerically stable log-sum-exp per row.
    m = jnp.max(x, axis=1, keepdims=True)                             # (TILE_N, 1)
    lse = m + jnp.log(jnp.sum(jnp.exp(x - m), axis=1, keepdims=True)) # (TILE_N, 1)

    loss = w_eff * (lse - x_y)                                        # (TILE_N, 1)

    # Mask rows past the true batch size (ragged last tile only).
    if n_rows % tile_n != 0:
        row = pl.program_id(0) * tile_n + jax.lax.broadcasted_iota(
            jnp.int32, (tn, 1), 0)
        loss = jnp.where(row < n_rows, loss, 0.0)

    out_ref[...] = loss


def _vmem_capacity_bytes():
    try:
        cap = getattr(pltpu.get_tpu_info(), "vmem_capacity_bytes", None)
        if cap:
            return int(cap)
    except Exception:
        pass
    return 64 * 1024 * 1024  # conservative fallback (v7x physical VMEM)


def _pick_tile_n(n, c, itemsize, vmem_cap):
    # Keep the double-buffered x block plus the f32 temporaries comfortably inside VMEM.
    row_bytes = max(c * itemsize, 1)
    budget = vmem_cap // 16
    tile = budget // row_bytes
    tile = max(8, min(tile, 8192, n))
    tile = max((tile // 8) * 8, 8)
    if tile >= n:
        return n  # single full-extent block (no 8-divisibility requirement)
    return tile


def cross_entropy_loss(x, target, weight=None, *, size_average=True,
                       ignore_index=-100, reduce=True, tile_n=None):
    """x: (N, C) float (f32 or bf16); target: (N,) int; weight: optional (C,) float."""
    n, c = x.shape
    target = target.astype(jnp.int32)
    if weight is None:
        w_per_class = jnp.ones((c,), jnp.float32)
    else:
        assert weight.ndim == 1 and weight.shape[0] == c
        w_per_class = weight.astype(jnp.float32)

    # Per-sample effective weight: weight[y_n] for valid targets, 0 for ignore_index.
    valid = target != ignore_index
    safe_t = jnp.where(valid, target, 0)
    w_eff = jnp.where(valid, w_per_class[safe_t], 0.0).reshape(n, 1).astype(jnp.float32)
    tgt2d = target.reshape(n, 1)

    vmem_cap = _vmem_capacity_bytes()
    if tile_n is None:
        tile_n = _pick_tile_n(n, c, x.dtype.itemsize, vmem_cap)
    assert tile_n == n or tile_n % 8 == 0, "tile_n must be a multiple of 8 or equal N"

    vmem_limit = min(int(vmem_cap * 0.75), 96 * 1024 * 1024)

    kernel = functools.partial(_cross_entropy_kernel, n_rows=n, tile_n=tile_n)

    out = pl.pallas_call(
        kernel,
        out_shape=jax.ShapeDtypeStruct((n, 1), jnp.float32),
        grid=(pl.cdiv(n, tile_n),),
        in_specs=[
            pl.BlockSpec((tile_n, c), lambda i: (i, 0)),   # x row slab
            pl.BlockSpec((tile_n, 1), lambda i: (i, 0)),   # targets
            pl.BlockSpec((tile_n, 1), lambda i: (i, 0)),   # per-sample weights
        ],
        out_specs=pl.BlockSpec((tile_n, 1), lambda i: (i, 0)),
        compiler_params=pltpu.CompilerParams(
            dimension_semantics=("parallel",),
            vmem_limit_bytes=vmem_limit,
        ),
    )(x, tgt2d, w_eff)

    per_sample = out[:, 0]
    if not reduce:
        return per_sample
    total = jnp.sum(per_sample)
    if size_average:
        return total / jnp.sum(w_eff)
    return total


def _reference(x, target, weight, size_average, ignore_index, reduce):
    x = x.astype(jnp.float32)
    n, c = x.shape
    valid = target != ignore_index
    safe_t = jnp.where(valid, target, 0)
    lse = jax.scipy.special.logsumexp(x, axis=1)
    x_y = jnp.take_along_axis(x, safe_t[:, None], axis=1)[:, 0]
    w = jnp.ones((c,), jnp.float32) if weight is None else weight.astype(jnp.float32)
    w_y = jnp.where(valid, w[safe_t], 0.0)
    per = w_y * (lse - x_y)
    if not reduce:
        return per
    total = jnp.sum(per)
    return total / jnp.sum(w_y) if size_average else total


if __name__ == "__main__":
    key = jax.random.PRNGKey(0)
    kx, kt = jax.random.split(key)

    N, C = 20, 16
    x = jax.random.normal(kx, (N, C), jnp.float32)
    target = jax.random.randint(kt, (N,), 0, C, jnp.int32)
    target = target.at[3].set(-100)  # exercise ignore_index
    weight = jnp.linspace(0.5, 1.5, C, dtype=jnp.float32)

    # Multi-tile path with a ragged last tile (N=20, TILE_N=8 -> grid of 3).
    loss = cross_entropy_loss(x, target, weight, size_average=True,
                              ignore_index=-100, reduce=True, tile_n=8)
    loss = jax.block_until_ready(loss)
    ref = _reference(x, target, weight, True, -100, True)
    assert jnp.allclose(loss, ref, rtol=1e-5, atol=1e-5), (loss, ref)

    # Per-sample (reduce=False) path with automatic tile selection.
    per = cross_entropy_loss(x, target, weight, ignore_index=-100, reduce=False)
    per = jax.block_until_ready(per)
    per_ref = _reference(x, target, weight, True, -100, False)
    assert jnp.allclose(per, per_ref, rtol=1e-5, atol=1e-5), (per, per_ref)

    print("KERNEL_OK")
</pallas_src>

<mosaic_0001>
module attributes {stable_mosaic.version = 11 : i64} {
  func.func @_cross_entropy_kernel(%arg0: i32, %arg1: memref<8x16xf32, #tpu.memory_space<vmem>>, %arg2: memref<8x1xi32, #tpu.memory_space<vmem>>, %arg3: memref<8x1xf32, #tpu.memory_space<vmem>>, %arg4: memref<8x1xf32, #tpu.memory_space<vmem>>) attributes {dimension_semantics = [#tpu.dimension_semantics<parallel>], iteration_bounds = array<i64: 3>, scalar_prefetch = 0 : i64, scratch_operands = 0 : i64, tpu.core_type = #tpu.core_type<tc>, window_params = [{transform_indices = @transform_0, window_bounds = array<i64: 8, 16>}, {transform_indices = @transform_1, window_bounds = array<i64: 8, 1>}, {transform_indices = @transform_2, window_bounds = array<i64: 8, 1>}, {transform_indices = @transform_3, window_bounds = array<i64: 8, 1>}]} {
    %c0 = arith.constant 0 : index
    %c0_0 = arith.constant 0 : index
    %0 = vector.load %arg1[%c0, %c0_0] : memref<8x16xf32, #tpu.memory_space<vmem>>, vector<8x16xf32>
    %c0_1 = arith.constant 0 : index
    %c0_2 = arith.constant 0 : index
    %1 = vector.load %arg2[%c0_1, %c0_2] : memref<8x1xi32, #tpu.memory_space<vmem>>, vector<8x1xi32>
    %c0_3 = arith.constant 0 : index
    %c0_4 = arith.constant 0 : index
    %2 = vector.load %arg3[%c0_3, %c0_4] : memref<8x1xf32, #tpu.memory_space<vmem>>, vector<8x1xf32>
    %3 = tpu.iota {dimensions = array<i32: 1>} : vector<8x16xi32>
    %4 = vector.broadcast %1 : vector<8x1xi32> to vector<8x16xi32>
    %5 = arith.cmpi eq, %3, %4 : vector<8x16xi32>
    %cst = arith.constant 0.000000e+00 : f32
    %6 = vector.broadcast %cst : f32 to vector<8x16xf32>
    %7 = arith.select %5, %0, %6 : vector<8x16xi1>, vector<8x16xf32>
    %cst_5 = arith.constant dense<0.000000e+00> : vector<8xf32>
    %8 = vector.multi_reduction <add>, %7, %cst_5 [1] : vector<8x16xf32> to vector<8xf32>
    %9 = vector.shape_cast %8 : vector<8xf32> to vector<8x1xf32>
    %cst_6 = arith.constant dense<0xFF800000> : vector<8xf32>
    %10 = vector.multi_reduction <maximumf>, %0, %cst_6 [1] : vector<8x16xf32> to vector<8xf32>
    %11 = vector.shape_cast %10 : vector<8xf32> to vector<8x1xf32>
    %12 = vector.broadcast %11 : vector<8x1xf32> to vector<8x16xf32>
    %13 = arith.subf %0, %12 : vector<8x16xf32>
    %14 = math.exp %13 : vector<8x16xf32>
    %cst_7 = arith.constant dense<0.000000e+00> : vector<8xf32>
    %15 = vector.multi_reduction <add>, %14, %cst_7 [1] : vector<8x16xf32> to vector<8xf32>
    %16 = vector.shape_cast %15 : vector<8xf32> to vector<8x1xf32>
    %17 = math.log %16 : vector<8x1xf32>
    %18 = arith.addf %11, %17 : vector<8x1xf32>
    %19 = arith.subf %18, %9 : vector<8x1xf32>
    %20 = arith.mulf %2, %19 : vector<8x1xf32>
    %c8_i32 = arith.constant 8 : i32
    %21 = arith.muli %arg0, %c8_i32 : i32
    %22 = tpu.iota {dimensions = array<i32: 0>} : vector<8x1xi32>
    %23 = vector.broadcast %21 : i32 to vector<8x1xi32>
    %24 = arith.addi %23, %22 : vector<8x1xi32>
    %c20_i32 = arith.constant 20 : i32
    %25 = vector.broadcast %c20_i32 : i32 to vector<8x1xi32>
    %26 = arith.cmpi slt, %24, %25 : vector<8x1xi32>
    %cst_8 = arith.constant 0.000000e+00 : f32
    %27 = vector.broadcast %cst_8 : f32 to vector<8x1xf32>
    %28 = arith.select %26, %20, %27 : vector<8x1xi1>, vector<8x1xf32>
    %c0_9 = arith.constant 0 : index
    %c0_10 = arith.constant 0 : index
    %29 = vector.load %arg4[%c0_9, %c0_10] : memref<8x1xf32, #tpu.memory_space<vmem>>, vector<8x1xf32>
    tpu.vector_store %arg4[%c0_9, %c0_10], %28 {strides = array<i32>} : memref<8x1xf32, #tpu.memory_space<vmem>>, vector<8x1xf32>,
    return
  }
  func.func @transform_0(%arg0: i32) -> (i32, i32) {
    %c0_i32 = arith.constant 0 : i32
    %c0_i32_0 = arith.constant 0 : i32
    return %arg0, %c0_i32 : i32, i32
  }
  func.func @transform_1(%arg0: i32) -> (i32, i32) {
    %c0_i32 = arith.constant 0 : i32
    %c0_i32_0 = arith.constant 0 : i32
    return %arg0, %c0_i32 : i32, i32
  }
  func.func @transform_2(%arg0: i32) -> (i32, i32) {
    %c0_i32 = arith.constant 0 : i32
    %c0_i32_0 = arith.constant 0 : i32
    return %arg0, %c0_i32 : i32, i32
  }
  func.func @transform_3(%arg0: i32) -> (i32, i32) {
    %c0_i32 = arith.constant 0 : i32
    %c0_i32_0 = arith.constant 0 : i32
    return %arg0, %c0_i32 : i32, i32
  }
}

</mosaic_0001>

<llo_original>
// kernel: tpu_custom_call.1
$region0: #{tpu_custom_call.1}
  #allocation0 [shape = 'u32[]', space=smem, size = 0x4, offset = 0x4, fixed_abs, tag = 'smem constant byte address 0x4 - core index']
  #allocation1 [shape = 'u32[72,128]{1,0:T(1,128)}', space=vmem, size = 0x9000, scoped, tag = 'internal scratch']
  %s0 = inlined_call_operand.vmem [shape: f32[20,16], index: 0, kind: input, shape index: {}]
  %s1 = inlined_call_operand.vmem [shape: s32[20,1], index: 1, kind: input, shape index: {}]
  %s2 = inlined_call_operand.vmem [shape: f32[20,1], index: 2, kind: input, shape index: {}]
  %s3 = inlined_call_operand.vmem [shape: f32[20,1], index: 3, kind: output, shape index: {}]
  %s4 = sld [smem:[#allocation0]]
  $region45: #{tpu_custom_call.1} parent=0
    _
  %s6 = ssub.s32 1, %s4
  %s7 = scalar_select 0, %s6, %s4
  loop: start=0, step=1, limit=5
  $region2: #{tpu_custom_call.1} parent=0 // loop_pre_header
    _
  $region3: #{tpu_custom_call.1} parent=0 // loop_header
    %s9 = sphi 0, %s13
    %p10 = scmp.ge.s32.totalorder %s9, 5
    %s19 = sphi 0, %s21
    %s22 = sphi 0, %s19
    %s23 = sphi 0, %s22
    %s39 = sphi 0, %s23
    %s45 = sphi 0, %s47
    %s48 = sphi 0, %s45
    %s49 = sphi 0, %s48
    %s65 = sphi 0, %s49
    %s71 = sphi 0, %s73
    %s74 = sphi 0, %s71
    %s75 = sphi 0, %s74
    %s91 = sphi 0, %s75
    %s97 = sphi 0, %s99
    %s100 = sphi 0, %s97
    %s101 = sphi 0, %s100
    %s117 = sphi 0, %s101
  $region4: #{tpu_custom_call.1} parent=0 // loop_header_branch
    %12 = sbr.rel (%p10) target = $region8
  $region5: #{tpu_custom_call.1} parent=0 // loop_body
    %s14 = ssub.s32 %s9, 1
    %s15 = ssub.s32 %s9, 2
    %s16 = sadd.s32 %s9, 1
    %s17 = ssub.s32 %s9, %s16
    %p18 = scmp.eq.s32.totalorder %s17, 0
    %s20 = sadd.s32 %s19, 1
    %s21 = scalar_select %p18, %s19, %s20
    %p24 = pneg %p18
    %p25 = scmp.eq.s32.totalorder %s9, 2
    %p26 = por %p24, %p25
    %p27 = scmp.ne.s32.totalorder %s19, %s22
    %p28 = scmp.eq.s32.totalorder %s9, 0
    %p29 = por %p27, %p28
    %p30 = scmp.ne.s32.totalorder %s19, %s22
    %p31 = scmp.eq.s32.totalorder %s14, 2
    %p32 = por %p30, %p31
    %p33 = scmp.ne.s32.totalorder %s22, %s23
    %p34 = scmp.eq.s32.totalorder %s14, 0
    %p35 = por %p33, %p34
    %p36 = scmp.ne.s32.totalorder %s22, %s23
    %p37 = scmp.eq.s32.totalorder %s15, 2
    %p38 = por %p36, %p37
    %p40 = scmp.ne.s32.totalorder %s23, %s39
    %p41 = scmp.eq.s32.totalorder %s15, 0
    %p42 = por %p40, %p41
    %s43 = ssub.s32 %s9, %s16
    %p44 = scmp.eq.s32.totalorder %s43, 0
    %s46 = sadd.s32 %s45, 1
    %s47 = scalar_select %p44, %s45, %s46
    %p50 = pneg %p44
    %p51 = scmp.eq.s32.totalorder %s9, 2
    %p52 = por %p50, %p51
    %p53 = scmp.ne.s32.totalorder %s45, %s48
    %p54 = scmp.eq.s32.totalorder %s9, 0
    %p55 = por %p53, %p54
    %p56 = scmp.ne.s32.totalorder %s45, %s48
    %p57 = scmp.eq.s32.totalorder %s14, 2
    %p58 = por %p56, %p57
    %p59 = scmp.ne.s32.totalorder %s48, %s49
    %p60 = scmp.eq.s32.totalorder %s14, 0
    %p61 = por %p59, %p60
    %p62 = scmp.ne.s32.totalorder %s48, %s49
    %p63 = scmp.eq.s32.totalorder %s15, 2
    %p64 = por %p62, %p63
    %p66 = scmp.ne.s32.totalorder %s49, %s65
    %p67 = scmp.eq.s32.totalorder %s15, 0
    %p68 = por %p66, %p67
    %s69 = ssub.s32 %s9, %s16
    %p70 = scmp.eq.s32.totalorder %s69, 0
    %s72 = sadd.s32 %s71, 1
    %s73 = scalar_select %p70, %s71, %s72
    %p76 = pneg %p70
    %p77 = scmp.eq.s32.totalorder %s9, 2
    %p78 = por %p76, %p77
    %p79 = scmp.ne.s32.totalorder %s71, %s74
    %p80 = scmp.eq.s32.totalorder %s9, 0
    %p81 = por %p79, %p80
    %p82 = scmp.ne.s32.totalorder %s71, %s74
    %p83 = scmp.eq.s32.totalorder %s14, 2
    %p84 = por %p82, %p83
    %p85 = scmp.ne.s32.totalorder %s74, %s75
    %p86 = scmp.eq.s32.totalorder %s14, 0
    %p87 = por %p85, %p86
    %p88 = scmp.ne.s32.totalorder %s74, %s75
    %p89 = scmp.eq.s32.totalorder %s15, 2
    %p90 = por %p88, %p89
    %p92 = scmp.ne.s32.totalorder %s75, %s91
    %p93 = scmp.eq.s32.totalorder %s15, 0
    %p94 = por %p92, %p93
    %s95 = ssub.s32 %s9, %s16
    %p96 = scmp.eq.s32.totalorder %s95, 0
    %s98 = sadd.s32 %s97, 1
    %s99 = scalar_select %p96, %s97, %s98
    %p102 = pneg %p96
    %p103 = scmp.eq.s32.totalorder %s9, 2
    %p104 = por %p102, %p103
    %p105 = scmp.ne.s32.totalorder %s97, %s100
    %p106 = scmp.eq.s32.totalorder %s9, 0
    %p107 = por %p105, %p106
    %p108 = scmp.ne.s32.totalorder %s97, %s100
    %p109 = scmp.eq.s32.totalorder %s14, 2
    %p110 = por %p108, %p109
    %p111 = scmp.ne.s32.totalorder %s100, %s101
    %p112 = scmp.eq.s32.totalorder %s14, 0
    %p113 = por %p111, %p112
    %p114 = scmp.ne.s32.totalorder %s100, %s101
    %p115 = scmp.eq.s32.totalorder %s15, 2
    %p116 = por %p114, %p115
    %p118 = scmp.ne.s32.totalorder %s101, %s117
    %p119 = scmp.eq.s32.totalorder %s15, 0
    %p120 = por %p118, %p119
    %p121 = scmp.le.s32.totalorder 1, %s9
    %p122 = scmp.lt.s32.totalorder %s9, 4
    %p123 = pnand %p121, %p122
    %p124 = pneg %p123
    // Predicated region
    $region9: #{tpu_custom_call.1} parent=5 // pred_check
      _
    $region10: #{tpu_custom_call.1} parent=5 // pred_check_branch
      %126 = sbr.rel (%p123) target = $region12
    $region11: #{tpu_custom_call.1} parent=5 // pred_region
      %s127 = ssub.s32 %s9, 1
    $region12: #{tpu_custom_call.1} parent=5 // pred_fallthru
      _
    %p128 = scmp.lt.s32.totalorder %s9, 3
    // Predicated region
    $region13: #{tpu_custom_call.1} parent=5 // pred_check
      %p129 = pneg %p128
    $region14: #{tpu_custom_call.1} parent=5 // pred_check_branch
      %131 = sbr.rel (%p129) target = $region16
    $region15: #{tpu_custom_call.1} parent=5 // pred_region
      // Predicated region
      $region17: #{tpu_custom_call.1} parent=15 // pred_check
        %p132 = pneg %p29
      $region18: #{tpu_custom_call.1} parent=15 // pred_check_branch
        %134 = sbr.rel (%p132) target = $region20
      $region19: #{tpu_custom_call.1} parent=15 // pred_region
        %p135 = scmp.lt.s32.totalorder %s9, 2
        %s136 = scalar_select %p135, %s9, 2
        %s137 = smul.addr %s136, 8
        %s138 = scalar_lea.vmem %s0, %s137
      $region20: #{tpu_custom_call.1} parent=15 // pred_fallthru
        _
      // Predicated region
      $region21: #{tpu_custom_call.1} parent=15 // pred_check
        %p139 = pneg %p55
      $region22: #{tpu_custom_call.1} parent=15 // pred_check_branch
        %141 = sbr.rel (%p139) target = $region24
      $region23: #{tpu_custom_call.1} parent=15 // pred_region
        %p142 = scmp.lt.s32.totalorder %s9, 2
        %s143 = scalar_select %p142, %s9, 2
        %s144 = smul.addr %s143, 8
        %s145 = scalar_lea.vmem %s1, %s144
      $region24: #{tpu_custom_call.1} parent=15 // pred_fallthru
        _
      // Predicated region
      $region25: #{tpu_custom_call.1} parent=15 // pred_check
        %p146 = pneg %p81
      $region26: #{tpu_custom_call.1} parent=15 // pred_check_branch
        %148 = sbr.rel (%p146) target = $region28
      $region27: #{tpu_custom_call.1} parent=15 // pred_region
        %p149 = scmp.lt.s32.totalorder %s9, 2
        %s150 = scalar_select %p149, %s9, 2
        %s151 = smul.addr %s150, 8
        %s152 = scalar_lea.vmem %s2, %s151
      $region28: #{tpu_custom_call.1} parent=15 // pred_fallthru
        _
    $region16: #{tpu_custom_call.1} parent=5 // pred_fallthru
      _
    %p153 = scmp.le.s32.totalorder 1, %s9
    %p154 = scmp.lt.s32.totalorder %s9, 4
    %p155 = pnand %p153, %p154
    %p156 = pneg %p155
    // Predicated region
    $region29: #{tpu_custom_call.1} parent=5 // pred_check
      _
    $region30: #{tpu_custom_call.1} parent=5 // pred_check_branch
      %158 = sbr.rel (%p155) target = $region32
    $region31: #{tpu_custom_call.1} parent=5 // pred_region
      %s159 = ssub.s32 %s9, 1
      %p160 = scmp.lt.s32.totalorder %s14, 2
      %s161 = scalar_select %p160, %s14, 2
      %s162 = smul.addr %s161, 8
      %s163 = scalar_lea.vmem %s0, %s162
      %p164 = pneg %p35
      %p165 = pneg %p32
      %p166 = scmp.lt.s32.totalorder %s14, 2
      %s167 = scalar_select %p166, %s14, 2
      %s168 = smul.addr %s167, 8
      %s169 = scalar_lea.vmem %s1, %s168
      %p170 = pneg %p61
      %p171 = pneg %p58
      %p172 = scmp.lt.s32.totalorder %s14, 2
      %s173 = scalar_select %p172, %s14, 2
      %s174 = smul.addr %s173, 8
      %s175 = scalar_lea.vmem %s2, %s174
      %p176 = pneg %p87
      %p177 = pneg %p84
      %p178 = pneg %p113
      %p179 = pneg %p110
      %p180 = scmp.lt.s32.totalorder %s14, 2
      %s181 = scalar_select %p180, %s14, 2
      %s182 = smul.addr %s181, 8
      %s183 = scalar_lea.vmem %s3, %s182
      %p184 = scmp.lt.s32.totalorder %s14, 2
      %s185 = scalar_select %p184, %s14, 2
      %s186 = smul.addr %s185, 8
      %s187 = scalar_lea.vmem %s0, %s186
      %p188 = scmp.lt.s32.totalorder %s14, 2
      %s189 = scalar_select %p188, %s14, 2
      %s190 = smul.addr %s189, 8
      %s191 = scalar_lea.vmem %s1, %s190
      %p192 = scmp.lt.s32.totalorder %s14, 2
      %s193 = scalar_select %p192, %s14, 2
      %s194 = smul.addr %s193, 8
      %s195 = scalar_lea.vmem %s2, %s194
      %p196 = scmp.lt.s32.totalorder %s14, 2
      %s197 = scalar_select %p196, %s14, 2
      %s198 = smul.addr %s197, 8
      %s199 = scalar_lea.vmem %s3, %s198
      %v200 = vld [vmem:[%s187] sm:$0xff]
      %v201 = vld [vmem:[%s191] sm:$0xff]
      %v202 = vld [vmem:[%s195] sm:$0xff]
      %v203 = vlaneseq
      %v204 = vand.u32 %v203, 127
      %205 = vset.pattern.permute.xlu0 0
      %206 = vperm.xlu0 %205, %v201
      %v207 = vpop.permute.xlu0 %206
      %vm208 = vcmp.eq.s32.totalorder %v204, %v207
      %v209 = vsel %vm208, %v200, 0.0
      %vm210 = vcmask 130048
      %v211 = vsel %vm210, %v209, 0.0
      %212 = vadd.xlane.f32.xlu0 %v211
      %v213 = vpop.xlane.xlu0 %212
      %v214 = vsel %vm210, %v200, -inf
      %215 = vmax.xlane.f32.xlu0 %v214
      %v216 = vpop.xlane.xlu0 %215
      %v217 = vsub.f32 %v200, %v216
      %v218 = vmul.f32 %v217, 1.442695
      %v219 = vpow.pop %v218
      %v220 = vsel %vm210, %v219, 0.0
      %221 = vadd.xlane.f32.xlu0 %v220
      %v222 = vpop.xlane.xlu0 %221
      %v223 = vlog2.pop %v222
      %v224 = vmul.f32 %v223, 0.6931472
      %v225 = vadd.f32 %v216, %v224
      %v226 = vsub.f32 %v225, %v213
      %v227 = vmul.f32 %v202, %v226
      %s228 = smul.u32 %s14, 8
      %v229 = vlaneseq
      %v230 = vshrl.u32 %v229, 7
      %v231 = vstv %s228
      %v232 = vadd.s32 %v231, %v230
      %vm233 = vcmp.lt.s32.totalorder %v232, 20
      %v234 = vsel %vm233, %v227, 0.0
      %vm235 = vcmask 7168
      %236 = vst.msk [vmem:[%s199] sm:$0xff] %vm235, %v234
      %p237 = scmp.lt.s32.totalorder %s14, 2
      %s238 = scalar_select %p237, %s14, 2
      %s239 = smul.addr %s238, 8
      %s240 = scalar_lea.vmem %s3, %s239
      // Predicated region
      $region33: #{tpu_custom_call.1} parent=31 // pred_check
        %p241 = pneg %p110
      $region34: #{tpu_custom_call.1} parent=31 // pred_check_branch
        %243 = sbr.rel (%p241) target = $region36
      $region35: #{tpu_custom_call.1} parent=31 // pred_region
        _
      $region36: #{tpu_custom_call.1} parent=31 // pred_fallthru
        _
    $region32: #{tpu_custom_call.1} parent=5 // pred_fallthru
      _
    %p244 = scmp.le.s32.totalorder 2, %s9
    // Predicated region
    $region37: #{tpu_custom_call.1} parent=5 // pred_check
      %p245 = pneg %p244
    $region38: #{tpu_custom_call.1} parent=5 // pred_check_branch
      %247 = sbr.rel (%p245) target = $region40
    $region39: #{tpu_custom_call.1} parent=5 // pred_region
      %s248 = ssub.s32 %s9, 2
      // Predicated region
      $region41: #{tpu_custom_call.1} parent=39 // pred_check
        %p249 = pneg %p116
      $region42: #{tpu_custom_call.1} parent=39 // pred_check_branch
        %251 = sbr.rel (%p249) target = $region44
      $region43: #{tpu_custom_call.1} parent=39 // pred_region
        %p252 = scmp.lt.s32.totalorder %s15, 2
        %s253 = scalar_select %p252, %s15, 2
        %s254 = smul.addr %s253, 8
        %s255 = scalar_lea.vmem %s3, %s254
      $region44: #{tpu_custom_call.1} parent=39 // pred_fallthru
        _
    $region40: #{tpu_custom_call.1} parent=5 // pred_fallthru
      _
  $region6: #{tpu_custom_call.1} parent=0 // loop_footer
    %s13 = sadd.s32 1, %s9
  $region7: #{tpu_custom_call.1} parent=0 // loop_footer_branch
    %8 = sbr.rel target = $region3
  $region8: #{tpu_custom_call.1} parent=0 // loop_exit
    _

</llo_original>
